<compile_context>
chip_gen: v6e
topology: v6e:2x2x1
jax: 0.10.0
libtpu: 0.0.40
codegen_flags: <defaults>
</compile_context>

<pallas_src>
import functools
import math

import jax
import jax.numpy as jnp
from jax.experimental import pallas as pl
from jax.experimental.pallas import tpu as pltpu


def _round_up(v: int, m: int) -> int:
    return ((v + m - 1) // m) * m


def _tile(dim: int, cap: int, mult: int) -> int:
    """Balanced tile: <= cap, multiple of `mult`, or the full (possibly unaligned) dim."""
    nblocks = max(1, -(-dim // cap))
    t = _round_up(-(-dim // nblocks), mult)
    if t >= dim:
        return dim  # single full-extent block (allowed even if not (8,128)-aligned)
    return t


def _linear_kernel(x_ref, w_ref, o_ref, acc_ref, *, n_k, tk, k_tail):
    """One (tm, tn) output tile; grid axis 2 is the K reduction.

    x_ref: (tm, tk) activation tile; w_ref: (tn, tk) weight tile. The shared K
    (last) dims are contracted directly on the MXU -- no explicit transpose.
    """
    k = pl.program_id(2)
    x = x_ref[...]
    w = w_ref[...]

    if k_tail is not None:
        # The last K block overhangs the real K. Zero both operands' K tails so
        # boundary-block garbage (possibly NaN) cannot corrupt valid outputs.
        limit = jnp.where(k == n_k - 1, k_tail, tk)
        x = jnp.where(jax.lax.broadcasted_iota(jnp.int32, x.shape, 1) < limit, x, 0)
        w = jnp.where(jax.lax.broadcasted_iota(jnp.int32, w.shape, 1) < limit, w, 0)

    part = jax.lax.dot_general(
        x,
        w,
        dimension_numbers=(((1,), (1,)), ((), ())),
        preferred_element_type=jnp.float32,
    )

    if n_k == 1:
        # Single K step: write straight through, skip the accumulator round trip.
        o_ref[...] = part.astype(o_ref.dtype)
    else:
        @pl.when(k == 0)
        def _():
            acc_ref[...] = jnp.zeros_like(acc_ref)

        acc_ref[...] += part

        @pl.when(k == n_k - 1)
        def _():
            o_ref[...] = acc_ref[...].astype(o_ref.dtype)


@functools.partial(jax.jit, static_argnames=("tm", "tn", "tk"))
def linear_pallas(x, weight, *, tm=None, tn=None, tk=None):
    """F.linear(x, weight): x (..., K), weight (N, K) -> (..., N)."""
    *lead, K = x.shape
    N, Kw = weight.shape
    if K != Kw:
        raise ValueError(f"in_features mismatch: x has {K}, weight has {Kw}")
    if weight.dtype != x.dtype:
        weight = weight.astype(x.dtype)

    M = math.prod(lead) if lead else 1
    x2d = x.reshape(M, K)

    itemsize = jnp.dtype(x.dtype).itemsize
    # Sub-32-bit dtypes pack 2/4 rows per sublane.
    sub_mult = max(8, 32 // max(1, itemsize))

    # Dtype-aware default tile caps.
    if tm is None:
        tm = 512
    if tn is None:
        tn = 512 if itemsize >= 4 else 1024
    if tk is None:
        tk = 1024 if itemsize >= 2 else 2048

    tm_eff = _tile(M, tm, sub_mult)
    tn_eff = _tile(N, tn, 128)
    tk_eff = _tile(K, tk, 128)

    n_m = -(-M // tm_eff)
    n_n = -(-N // tn_eff)
    n_k = -(-K // tk_eff)

    # v7x shards the "parallel" grid axes over its 2 TensorCores: make sure
    # there are at least two (i, j) blocks when the output width allows it.
    if n_m * n_n == 1 and tn_eff >= 256 and tn_eff % 256 == 0:
        tn_eff //= 2
        n_n = -(-N // tn_eff)

    k_tail = None
    if K % tk_eff:
        k_tail = K - (n_k - 1) * tk_eff  # valid K lanes in the last K block

    # VMEM budget: double-buffered input tiles + double-buffered output tile
    # + f32 accumulator. Generation-aware cap with headroom; never below the
    # 32 MiB default scoped VMEM.
    est = (
        2 * (tm_eff * tk_eff + tn_eff * tk_eff) * itemsize
        + 2 * tm_eff * tn_eff * itemsize
        + tm_eff * tn_eff * 4
    )
    try:
        vmem_cap = int(pltpu.get_tpu_info().vmem_capacity_bytes)
    except Exception:  # pragma: no cover - fall back to the smallest (v7x) VMEM
        vmem_cap = 64 * 1024 * 1024
    vmem_limit = min((vmem_cap * 3) // 4, max(32 * 1024 * 1024, 2 * est))

    kernel = functools.partial(_linear_kernel, n_k=n_k, tk=tk_eff, k_tail=k_tail)

    out2d = pl.pallas_call(
        kernel,
        out_shape=jax.ShapeDtypeStruct((M, N), x.dtype),
        grid_spec=pltpu.PrefetchScalarGridSpec(
            num_scalar_prefetch=0,
            grid=(n_m, n_n, n_k),
            in_specs=[
                pl.BlockSpec((tm_eff, tk_eff), lambda i, j, k: (i, k)),  # x tiles
                pl.BlockSpec((tn_eff, tk_eff), lambda i, j, k: (j, k)),  # weight tiles
            ],
            out_specs=pl.BlockSpec((tm_eff, tn_eff), lambda i, j, k: (i, j)),
            scratch_shapes=[pltpu.VMEM((tm_eff, tn_eff), jnp.float32)],
        ),
        compiler_params=pltpu.CompilerParams(
            dimension_semantics=("parallel", "parallel", "arbitrary"),
            vmem_limit_bytes=int(vmem_limit),
        ),
    )(x2d, weight)

    return out2d.reshape(*lead, N)


def init_weight(out_features, in_features, key, dtype=jnp.float32):
    # Deterministic truncated-normal init, std = sqrt(2/(in+out)) (cs336 convention).
    std = (2.0 / (in_features + out_features)) ** 0.5
    w = jax.random.truncated_normal(
        key, -3.0, 3.0, (out_features, in_features), jnp.float32
    ) * std
    return w.astype(dtype)


if __name__ == "__main__":
    key = jax.random.PRNGKey(0)
    kx, kw, kx2, kw2 = jax.random.split(key, 4)

    # 1) Aligned shapes (the common transformer case), f32.
    batch, seq, in_features, out_features = 2, 8, 128, 256
    x = jax.random.normal(kx, (batch, seq, in_features), jnp.float32)
    weight = init_weight(out_features, in_features, kw)

    y = jax.block_until_ready(linear_pallas(x, weight))
    y_ref = jnp.einsum("bsk,nk->bsn", x, weight)
    assert y.shape == (batch, seq, out_features)
    assert jnp.allclose(y, y_ref, atol=1e-3, rtol=1e-3)

    # 2) bf16 inputs: exercises dtype-aware tiles / sublane packing.
    xb = x.astype(jnp.bfloat16)
    wb = weight.astype(jnp.bfloat16)
    yb = jax.block_until_ready(linear_pallas(xb, wb))
    yb_ref = jnp.einsum(
        "bsk,nk->bsn", xb.astype(jnp.float32), wb.astype(jnp.float32)
    )
    assert yb.dtype == jnp.bfloat16
    assert jnp.allclose(yb.astype(jnp.float32), yb_ref, atol=5e-2, rtol=5e-2)

    # 3) Non-tile-aligned M/N/K with small forced tiles: exercises the in-kernel
    #    K-tail masking and the boundary-block (dropped OOB rows/cols) paths,
    #    without any per-call padding of x or the weight.
    x2 = jax.random.normal(kx2, (7, 40, 300), jnp.float32)
    w2 = init_weight(200, 300, kw2)
    y2 = jax.block_until_ready(linear_pallas(x2, w2, tm=256, tn=128, tk=256))
    y2_ref = jnp.einsum("bsk,nk->bsn", x2, w2)
    assert y2.shape == (7, 40, 200)
    assert jnp.allclose(y2, y2_ref, atol=1e-3, rtol=1e-3)

    print("KERNEL_OK")
</pallas_src>

<mosaic_0001>
module attributes {stable_mosaic.version = 11 : i64} {
  func.func @_linear_kernel(%arg0: i32, %arg1: i32, %arg2: i32, %arg3: memref<16x128xf32, #tpu.memory_space<vmem>>, %arg4: memref<128x128xf32, #tpu.memory_space<vmem>>, %arg5: memref<16x128xf32, #tpu.memory_space<vmem>>, %arg6: memref<16x128xf32, #tpu.memory_space<vmem>>) attributes {dimension_semantics = [#tpu.dimension_semantics<parallel>, #tpu.dimension_semantics<parallel>, #tpu.dimension_semantics<arbitrary>], iteration_bounds = array<i64: 1, 2, 1>, scalar_prefetch = 0 : i64, scratch_operands = 1 : i64, tpu.core_type = #tpu.core_type<tc>, window_params = [{transform_indices = @transform_0, window_bounds = array<i64: 16, 128>}, {transform_indices = @transform_1, window_bounds = array<i64: 128, 128>}, {transform_indices = @transform_2, window_bounds = array<i64: 16, 128>}]} {
    %c0 = arith.constant 0 : index
    %c0_0 = arith.constant 0 : index
    %0 = vector.load %arg3[%c0, %c0_0] : memref<16x128xf32, #tpu.memory_space<vmem>>, vector<16x128xf32>
    %c0_1 = arith.constant 0 : index
    %c0_2 = arith.constant 0 : index
    %1 = vector.load %arg4[%c0_1, %c0_2] : memref<128x128xf32, #tpu.memory_space<vmem>>, vector<128x128xf32>
    %cst = arith.constant dense<0.000000e+00> : vector<16x128xf32>
    %2 = tpu.matmul %0, %1, %cst {dimension_numbers = #tpu.dot_dimension_numbers<[1], [1], [0], [0], [0, 0, 1, 0], [], []>} : vector<16x128xf32>, vector<128x128xf32>, vector<16x128xf32> -> vector<16x128xf32>
    %c0_3 = arith.constant 0 : index
    %c0_4 = arith.constant 0 : index
    %3 = vector.load %arg5[%c0_3, %c0_4] : memref<16x128xf32, #tpu.memory_space<vmem>>, vector<16x128xf32>
    tpu.vector_store %arg5[%c0_3, %c0_4], %2 {strides = array<i32>} : memref<16x128xf32, #tpu.memory_space<vmem>>, vector<16x128xf32>,
    return
  }
  func.func @transform_0(%arg0: i32, %arg1: i32, %arg2: i32) -> (i32, i32) {
    %c0_i32 = arith.constant 0 : i32
    return %arg0, %arg2 : i32, i32
  }
  func.func @transform_1(%arg0: i32, %arg1: i32, %arg2: i32) -> (i32, i32) {
    %c0_i32 = arith.constant 0 : i32
    return %arg1, %arg2 : i32, i32
  }
  func.func @transform_2(%arg0: i32, %arg1: i32, %arg2: i32) -> (i32, i32) {
    %c0_i32 = arith.constant 0 : i32
    return %arg0, %arg1 : i32, i32
  }
}

</mosaic_0001>

<llo_original>
// kernel: linear_pallas.1
$region0: #{linear_pallas.1}
  #allocation0 [shape = 'u32[]', space=smem, size = 0x4, offset = 0x4, fixed_abs, tag = 'smem constant byte address 0x4 - core index']
  #allocation1 [shape = 'u32[144,128]{1,0:T(1,128)}', space=vmem, size = 0x12000, scoped, tag = 'internal scratch']
  #allocation2 [shape = 'f32[16,128]{1,0:T(8,128)}', space=vmem, size = 0x2000, scoped, tag = 'scratch operand']
  %s0 = inlined_call_operand.hbm [shape: f32[16,128], index: 0, kind: input, shape index: {}]
  %s1 = inlined_call_operand.hbm [shape: f32[256,128], index: 1, kind: input, shape index: {}]
  %s2 = inlined_call_operand.hbm [shape: f32[16,256], index: 2, kind: output, shape index: {}]
  %s3 = sld [smem:[#allocation0]]
  $region49: #{linear_pallas.1} parent=0
    _
  %s5 = ssub.s32 1, %s3
  %s6 = scalar_select 0, %s5, %s3
  $region1: #{linear_pallas.1} parent=0
    #allocation3 [shape = 'u8[8192]{0}', space=vmem, size = 0x2000, scoped, tag = 'input window, operand 0, single buffered']
    #allocation4 [shape = 's32[2]{0}', space=sflag, size = 0x8, scoped, tag = 'scoped memory for linear_pallas.1']
    #allocation5 [shape = 's32[2]{0}', space=sflag, size = 0x8, scoped, tag = 'scoped memory for linear_pallas.1']
    #allocation6 [shape = 'u8[131072]{0}', space=vmem, size = 0x20000, scoped, tag = 'input window, operand 1']
    #allocation7 [shape = 's32[2]{0}', space=sflag, size = 0x8, scoped, tag = 'scoped memory for linear_pallas.1']
    #allocation8 [shape = 'u8[16384]{0}', space=vmem, size = 0x4000, scoped, tag = 'output window, operand 0']
    %7 = vsyncpa [#allocation4], 0
    %8 = vsyncpa [#allocation7], 0
    %s9 = scalar_lea.sflag [#allocation7], 1
    %10 = vsyncpa %s9, 0
    %11 = vsyncpa [#allocation5], 0
    %s12 = scalar_lea.sflag [#allocation5], 1
    %13 = vsyncpa %s12, 0
    loop: start=0, step=1, limit=4
    $region2: #{linear_pallas.1} parent=1 // loop_pre_header
      _
    $region3: #{linear_pallas.1} parent=1 // loop_header
      %s15 = sphi 0, %s19
      %p16 = scmp.ge.s32.totalorder %s15, 4
      %s22 = sphi 0, %s41
      %s23 = sphi 0, %s37
      %s24 = sphi 0, %s33
      %s25 = sphi 0, %s22
      %s26 = sphi 0, %s23
      %s27 = sphi 0, %s24
      %s28 = sphi 0, %s25
      %s29 = sphi 0, %s26
      %s30 = sphi 0, %s27
      %s46 = sphi 0, %s48
      %s49 = sphi 0, %s46
      %s50 = sphi 0, %s49
      %s66 = sphi 0, %s50
      %s74 = sphi 0, %s76
      %s77 = sphi 0, %s74
      %s78 = sphi 0, %s77
      %s94 = sphi 0, %s78
      %s102 = sphi 0, %s104
      %s105 = sphi 0, %s102
      %s106 = sphi 0, %s105
      %s122 = sphi 0, %s106
    $region4: #{linear_pallas.1} parent=1 // loop_header_branch
      %18 = sbr.rel (%p16) target = $region8
    $region5: #{linear_pallas.1} parent=1 // loop_body
      %s20 = ssub.s32 %s15, 1
      %s21 = ssub.s32 %s15, 2
      %s31 = sadd.s32 1, %s24
      %p32 = scmp.ge.s32.totalorder %s31, 1
      %s33 = scalar_select %p32, 0, %s31
      %s34 = sadd.s32 1, %s23
      %s35 = scalar_select %p32, %s34, %s23
      %p36 = scmp.ge.s32.totalorder %s35, 2
      %s37 = scalar_select %p36, 0, %s35
      %s38 = sadd.s32 1, %s22
      %s39 = scalar_select %p36, %s38, %s22
      %p40 = scmp.ge.s32.totalorder %s39, 1
      %s41 = scalar_select %p40, 0, %s39
      %s42 = ssub.s32 %s22, %s41
      %s43 = ssub.s32 %s24, %s33
      %s44 = sor.u32 %s42, %s43
      %p45 = scmp.eq.s32.totalorder %s44, 0
      %s47 = sadd.s32 %s46, 1
      %s48 = scalar_select %p45, %s46, %s47
      %p51 = pneg %p45
      %p52 = scmp.eq.s32.totalorder %s15, 1
      %p53 = por %p51, %p52
      %p54 = scmp.ne.s32.totalorder %s46, %s49
      %p55 = scmp.eq.s32.totalorder %s15, 0
      %p56 = por %p54, %p55
      %p57 = scmp.ne.s32.totalorder %s46, %s49
      %p58 = scmp.eq.s32.totalorder %s20, 1
      %p59 = por %p57, %p58
      %p60 = scmp.ne.s32.totalorder %s49, %s50
      %p61 = scmp.eq.s32.totalorder %s20, 0
      %p62 = por %p60, %p61
      %p63 = scmp.ne.s32.totalorder %s49, %s50
      %p64 = scmp.eq.s32.totalorder %s21, 1
      %p65 = por %p63, %p64
      %p67 = scmp.ne.s32.totalorder %s50, %s66
      %p68 = scmp.eq.s32.totalorder %s21, 0
      %p69 = por %p67, %p68
      %s70 = ssub.s32 %s23, %s37
      %s71 = ssub.s32 %s24, %s33
      %s72 = sor.u32 %s70, %s71
      %p73 = scmp.eq.s32.totalorder %s72, 0
      %s75 = sadd.s32 %s74, 1
      %s76 = scalar_select %p73, %s74, %s75
      %p79 = pneg %p73
      %p80 = scmp.eq.s32.totalorder %s15, 1
      %p81 = por %p79, %p80
      %p82 = scmp.ne.s32.totalorder %s74, %s77
      %p83 = scmp.eq.s32.totalorder %s15, 0
      %p84 = por %p82, %p83
      %p85 = scmp.ne.s32.totalorder %s74, %s77
      %p86 = scmp.eq.s32.totalorder %s20, 1
      %p87 = por %p85, %p86
      %p88 = scmp.ne.s32.totalorder %s77, %s78
      %p89 = scmp.eq.s32.totalorder %s20, 0
      %p90 = por %p88, %p89
      %p91 = scmp.ne.s32.totalorder %s77, %s78
      %p92 = scmp.eq.s32.totalorder %s21, 1
      %p93 = por %p91, %p92
      %p95 = scmp.ne.s32.totalorder %s78, %s94
      %p96 = scmp.eq.s32.totalorder %s21, 0
      %p97 = por %p95, %p96
      %s98 = ssub.s32 %s22, %s41
      %s99 = ssub.s32 %s23, %s37
      %s100 = sor.u32 %s98, %s99
      %p101 = scmp.eq.s32.totalorder %s100, 0
      %s103 = sadd.s32 %s102, 1
      %s104 = scalar_select %p101, %s102, %s103
      %p107 = pneg %p101
      %p108 = scmp.eq.s32.totalorder %s15, 1
      %p109 = por %p107, %p108
      %p110 = scmp.ne.s32.totalorder %s102, %s105
      %p111 = scmp.eq.s32.totalorder %s15, 0
      %p112 = por %p110, %p111
      %p113 = scmp.ne.s32.totalorder %s102, %s105
      %p114 = scmp.eq.s32.totalorder %s20, 1
      %p115 = por %p113, %p114
      %p116 = scmp.ne.s32.totalorder %s105, %s106
      %p117 = scmp.eq.s32.totalorder %s20, 0
      %p118 = por %p116, %p117
      %p119 = scmp.ne.s32.totalorder %s105, %s106
      %p120 = scmp.eq.s32.totalorder %s21, 1
      %p121 = por %p119, %p120
      %p123 = scmp.ne.s32.totalorder %s106, %s122
      %p124 = scmp.eq.s32.totalorder %s21, 0
      %p125 = por %p123, %p124
      %p126 = scmp.le.s32.totalorder 1, %s15
      %p127 = scmp.lt.s32.totalorder %s15, 3
      %p128 = pnand %p126, %p127
      %p129 = pneg %p128
      // Predicated region
      $region9: #{linear_pallas.1} parent=5 // pred_check
        _
      $region10: #{linear_pallas.1} parent=5 // pred_check_branch
        %131 = sbr.rel (%p128) target = $region12
      $region11: #{linear_pallas.1} parent=5 // pred_region
        %s132 = ssub.s32 %s15, 1
        // Predicated region
        $region13: #{linear_pallas.1} parent=11 // pred_check
          %p133 = pneg %p62
        $region14: #{linear_pallas.1} parent=11 // pred_check_branch
          %135 = sbr.rel (%p133) target = $region16
        $region15: #{linear_pallas.1} parent=11 // pred_region
          %s136 = smul.u32 2, %s25
          %s138 = ssub.s32 256, 256
          %139 = vsyncadd [#allocation4], %s138
          %s140 = sadd.s32 %s27, %s136
          %s141 = smul.addr %s140, 128
          %s142 = scalar_lea.hbm %s0, %s141
          %s143 = sshll.u32 [#allocation3], 4
          %s144 = int_to_ptr.vmem [resolvable:$true] %s143
          %149 = dma.hbm_to_vmem [thread:$0]  %s142, 256, %s144, [#allocation4], 128, 128, 8
        $region16: #{linear_pallas.1} parent=11 // pred_fallthru
          _
      $region12: #{linear_pallas.1} parent=5 // pred_fallthru
        _
      %p150 = scmp.lt.s32.totalorder %s15, 2
      // Predicated region
      $region17: #{linear_pallas.1} parent=5 // pred_check
        %p151 = pneg %p150
      $region18: #{linear_pallas.1} parent=5 // pred_check_branch
        %153 = sbr.rel (%p151) target = $region20
      $region19: #{linear_pallas.1} parent=5 // pred_region
        // Predicated region
        $region21: #{linear_pallas.1} parent=19 // pred_check
          %p154 = pneg %p84
        $region22: #{linear_pallas.1} parent=19 // pred_check_branch
          %156 = sbr.rel (%p154) target = $region24
        $region23: #{linear_pallas.1} parent=19 // pred_region
          %s157 = sand.u32 %s74, 1
          %s158 = scalar_lea.sflag [#allocation7], %s157
          %s159 = sand.u32 %s74, 1
          %s160 = smul.addr %s159, 128
          %s161 = scalar_lea.vmem [#allocation6], %s160
          %s162 = smul.u32 16, %s23
          %s164 = ssub.s32 2048, 2048
          %165 = vsyncadd %s158, %s164
          %s166 = sadd.s32 %s24, %s162
          %s167 = smul.addr %s166, 128
          %s168 = scalar_lea.hbm %s1, %s167
          %s169 = sshll.u32 %s161, 4
          %s170 = int_to_ptr.vmem [resolvable:$true] %s169
          %175 = dma.hbm_to_vmem [thread:$0]  %s168, 2048, %s170, %s158, 128, 128, 8
        $region24: #{linear_pallas.1} parent=19 // pred_fallthru
          _
      $region20: #{linear_pallas.1} parent=5 // pred_fallthru
        _
      %p176 = scmp.le.s32.totalorder 1, %s15
      %p177 = scmp.lt.s32.totalorder %s15, 3
      %p178 = pnand %p176, %p177
      %p179 = pneg %p178
      // Predicated region
      $region25: #{linear_pallas.1} parent=5 // pred_check
        _
      $region26: #{linear_pallas.1} parent=5 // pred_check_branch
        %181 = sbr.rel (%p178) target = $region28
      $region27: #{linear_pallas.1} parent=5 // pred_region
        %s182 = ssub.s32 %s15, 1
        // Predicated region
        $region29: #{linear_pallas.1} parent=27 // pred_check
          %p183 = pneg %p62
        $region30: #{linear_pallas.1} parent=27 // pred_check_branch
          %185 = sbr.rel (%p183) target = $region32
        $region31: #{linear_pallas.1} parent=27 // pred_region
          %186 = dma.done [#allocation4], 256
        $region32: #{linear_pallas.1} parent=27 // pred_fallthru
          _
        %s187 = sand.u32 %s77, 1
        %s188 = scalar_lea.sflag [#allocation7], %s187
        %s189 = sand.u32 %s77, 1
        %s190 = smul.addr %s189, 128
        %s191 = scalar_lea.vmem [#allocation6], %s190
        // Predicated region
        $region33: #{linear_pallas.1} parent=27 // pred_check
          %p192 = pneg %p90
        $region34: #{linear_pallas.1} parent=27 // pred_check_branch
          %194 = sbr.rel (%p192) target = $region36
        $region35: #{linear_pallas.1} parent=27 // pred_region
          %195 = dma.done %s188, 2048
        $region36: #{linear_pallas.1} parent=27 // pred_fallthru
          _
        %p196 = pneg %p62
        %p197 = pneg %p59
        %s198 = sand.u32 %s77, 1
        %s199 = scalar_lea.sflag [#allocation7], %s198
        %s200 = sand.u32 %s77, 1
        %s201 = smul.addr %s200, 128
        %s202 = scalar_lea.vmem [#allocation6], %s201
        %p203 = pneg %p90
        %p204 = pneg %p87
        %p205 = pneg %p118
        %p206 = pneg %p115
        %s207 = sand.u32 %s105, 1
        %s208 = scalar_lea.sflag [#allocation5], %s207
        %s209 = sand.u32 %s105, 1
        %s210 = smul.addr %s209, 16
        %s211 = scalar_lea.vmem [#allocation8], %s210
        %s212 = smul.u32 2, %s25
        %s213 = smul.u32 16, %s26
        %s214 = smul.u32 2, %s25
        %v215 = vld [vmem:[#allocation3] sm:$0xff]
        %v216 = vld [vmem:[#allocation3 + $0x8] sm:$0xff]
        %v217 = vld [vmem:[%s191] sm:$0xff]
        %v218 = vld [vmem:[%s191 + $0x8] sm:$0xff]
        %v219 = vld [vmem:[%s191 + $0x10] sm:$0xff]
        %v220 = vld [vmem:[%s191 + $0x18] sm:$0xff]
        %v221 = vld [vmem:[%s191 + $0x20] sm:$0xff]
        %v222 = vld [vmem:[%s191 + $0x28] sm:$0xff]
        %v223 = vld [vmem:[%s191 + $0x30] sm:$0xff]
        %v224 = vld [vmem:[%s191 + $0x38] sm:$0xff]
        %v225 = vld [vmem:[%s191 + $0x40] sm:$0xff]
        %v226 = vld [vmem:[%s191 + $0x48] sm:$0xff]
        %v227 = vld [vmem:[%s191 + $0x50] sm:$0xff]
        %v228 = vld [vmem:[%s191 + $0x58] sm:$0xff]
        %v229 = vld [vmem:[%s191 + $0x60] sm:$0xff]
        %v230 = vld [vmem:[%s191 + $0x68] sm:$0xff]
        %v231 = vld [vmem:[%s191 + $0x70] sm:$0xff]
        %v232 = vld [vmem:[%s191 + $0x78] sm:$0xff]
        %233 = vmatprep.subr.mxu0 0.0
        %234 = vmatpush1.xpose.msra.mxu0 %v232
        %235 = vmatprep.subr.mxu0 0.0
        %236 = vmatpush1.xpose.msra.mxu0 %v231
        %237 = vmatprep.subr.mxu0 0.0
        %238 = vmatpush1.xpose.msra.mxu0 %v230
        %239 = vmatprep.subr.mxu0 0.0
        %240 = vmatpush1.xpose.msra.mxu0 %v229
        %241 = vmatprep.subr.mxu0 0.0
        %242 = vmatpush1.xpose.msra.mxu0 %v228
        %243 = vmatprep.subr.mxu0 0.0
        %244 = vmatpush1.xpose.msra.mxu0 %v227
        %245 = vmatprep.subr.mxu0 0.0
        %246 = vmatpush1.xpose.msra.mxu0 %v226
        %247 = vmatprep.subr.mxu0 0.0
        %248 = vmatpush1.xpose.msra.mxu0 %v225
        %249 = vmatprep.subr.mxu0 0.0
        %250 = vmatpush1.xpose.msra.mxu0 %v224
        %251 = vmatprep.subr.mxu0 0.0
        %252 = vmatpush1.xpose.msra.mxu0 %v223
        %253 = vmatprep.subr.mxu0 0.0
        %254 = vmatpush1.xpose.msra.mxu0 %v222
        %255 = vmatprep.subr.mxu0 0.0
        %256 = vmatpush1.xpose.msra.mxu0 %v221
        %257 = vmatprep.subr.mxu0 0.0
        %258 = vmatpush1.xpose.msra.mxu0 %v220
        %259 = vmatprep.subr.mxu0 0.0
        %260 = vmatpush1.xpose.msra.mxu0 %v219
        %261 = vmatprep.subr.mxu0 0.0
        %262 = vmatpush1.xpose.msra.mxu0 %v218
        %263 = vmatprep.subr.mxu0 0.0
        %264 = vmatpush1.xpose.msra.mxu0 %v217
        %265 = vmatprep.subr.mxu0 0.0
        %266 = vmatpush2.xpose.msra.mxu0 0.0
        %267 = vmatprep.subr.mxu0 0.0
        %268 = vmatpush2.xpose.msra.mxu0 0.0
        %269 = vmatprep.subr.mxu0 0.0
        %270 = vmatpush2.xpose.msra.mxu0 0.0
        %271 = vmatprep.subr.mxu0 0.0
        %272 = vmatpush2.xpose.msra.mxu0 0.0
        %273 = vmatprep.subr.mxu0 0.0
        %274 = vmatpush2.xpose.msra.mxu0 0.0
        %275 = vmatprep.subr.mxu0 0.0
        %276 = vmatpush2.xpose.msra.mxu0 0.0
        %277 = vmatprep.subr.mxu0 0.0
        %278 = vmatpush2.xpose.msra.mxu0 0.0
        %279 = vmatprep.subr.mxu0 0.0
        %280 = vmatpush2.xpose.msra.mxu0 0.0
        %281 = vmatprep.subr.mxu0 0.0
        %282 = vmatpush2.xpose.msra.mxu0 0.0
        %283 = vmatprep.subr.mxu0 0.0
        %284 = vmatpush2.xpose.msra.mxu0 0.0
        %285 = vmatprep.subr.mxu0 0.0
        %286 = vmatpush2.xpose.msra.mxu0 0.0
        %287 = vmatprep.subr.mxu0 0.0
        %288 = vmatpush2.xpose.msra.mxu0 0.0
        %289 = vmatprep.subr.mxu0 0.0
        %290 = vmatpush2.xpose.msra.mxu0 0.0
        %291 = vmatprep.subr.mxu0 0.0
        %292 = vmatpush2.xpose.msra.mxu0 0.0
        %293 = vmatprep.subr.mxu0 0.0
        %294 = vmatpush2.xpose.msra.mxu0 0.0
        %295 = vmatprep.subr.mxu0 0.0
        %296 = vmatpush2.xpose.msra.mxu0 0.0
        %297 = vmatprep.mubr.f32.mxu0 0.0
        %298 = vmatmul.mubr.f32.gmra.mxu0 %v215
        %v299 = vpop.f32.mrf.mxu0
        %v300 = vadd.f32 0.0, %v299
        %v301 = vpop.f32.mrf.mxu0
        %302 = vmatprep.mubr.f32.mxu0 0.0
        %303 = vmatmul.mubr.f32.gmra.mxu0 %v216
        %v304 = vpop.f32.mrf.mxu0
        %v305 = vadd.f32 0.0, %v304
        %v306 = vpop.f32.mrf.mxu0
        %307 = vdwg.mxu0
        %308 = vst [vmem:[%s211] sm:$0xff] %v300
        %309 = vst [vmem:[%s211 + $0x8] sm:$0xff] %v305
        %s310 = sand.u32 %s105, 1
        %s311 = scalar_lea.sflag [#allocation5], %s310
        %s312 = sand.u32 %s105, 1
        %s313 = smul.addr %s312, 16
        %s314 = scalar_lea.vmem [#allocation8], %s313
        // Predicated region
        $region37: #{linear_pallas.1} parent=27 // pred_check
          %p315 = pneg %p115
        $region38: #{linear_pallas.1} parent=27 // pred_check_branch
          %317 = sbr.rel (%p315) target = $region40
        $region39: #{linear_pallas.1} parent=27 // pred_region
          %s318 = smul.u32 2, %s25
          %s320 = ssub.s32 256, 256
          %321 = vsyncadd %s311, %s320
          %s322 = smul.addr %s318, 2
          %s323 = sadd.s32 %s26, %s322
          %s324 = smul.addr %s323, 128
          %s325 = scalar_lea.hbm %s2, %s324
          %s326 = sshll.u32 %s314, 4
          %s327 = int_to_ptr.vmem [resolvable:$true] %s326
          %332 = dma.vmem_to_hbm [thread:$0]  %s327, 256, %s325, %s311, 128, 256, 8
        $region40: #{linear_pallas.1} parent=27 // pred_fallthru
          _
      $region28: #{linear_pallas.1} parent=5 // pred_fallthru
        _
      %p333 = scmp.le.s32.totalorder 2, %s15
      // Predicated region
      $region41: #{linear_pallas.1} parent=5 // pred_check
        %p334 = pneg %p333
      $region42: #{linear_pallas.1} parent=5 // pred_check_branch
        %336 = sbr.rel (%p334) target = $region44
      $region43: #{linear_pallas.1} parent=5 // pred_region
        %s337 = ssub.s32 %s15, 2
        // Predicated region
        $region45: #{linear_pallas.1} parent=43 // pred_check
          %p338 = pneg %p121
        $region46: #{linear_pallas.1} parent=43 // pred_check_branch
          %340 = sbr.rel (%p338) target = $region48
        $region47: #{linear_pallas.1} parent=43 // pred_region
          %s341 = sand.u32 %s106, 1
          %s342 = scalar_lea.sflag [#allocation5], %s341
          %s343 = sand.u32 %s106, 1
          %s344 = smul.addr %s343, 16
          %s345 = scalar_lea.vmem [#allocation8], %s344
          %346 = dma.done %s342, 256
        $region48: #{linear_pallas.1} parent=43 // pred_fallthru
          _
      $region44: #{linear_pallas.1} parent=5 // pred_fallthru
        _
    $region6: #{linear_pallas.1} parent=1 // loop_footer
      %s19 = sadd.s32 1, %s15
    $region7: #{linear_pallas.1} parent=1 // loop_footer_branch
      %14 = sbr.rel target = $region3
    $region8: #{linear_pallas.1} parent=1 // loop_exit
      _
    %347 = vsyncpa [#allocation4], 1
    %s348 = scalar_lea.sflag [#allocation4], 1
    %349 = vsyncpa %s348, 1
    %350 = vsyncpa [#allocation7], 1
    %s351 = scalar_lea.sflag [#allocation7], 1
    %352 = vsyncpa %s351, 1
    %353 = vsyncpa [#allocation5], 1
    %s354 = scalar_lea.sflag [#allocation5], 1
    %355 = vsyncpa %s354, 1

</llo_original>
